<compile_context>
chip_gen: v7x
topology: tpu7x:2x2x1
jax: 0.10.0
libtpu: 0.0.40
codegen_flags: <defaults>
</compile_context>

<pallas_src>
import math

import jax
import jax.numpy as jnp
from jax.experimental import pallas as pl
from jax.experimental.pallas import tpu as pltpu


def _lmf_kernel(ax_ref, vx_ref, aw_ref, ab_ref, vw_ref, vb_ref,
                wsum_ref, bias_ref, o_ref):
    # (tb, A) @ (A, rank*O) and (tb, V) @ (V, rank*O) on the MXU, f32 acc.
    fa = jnp.dot(ax_ref[...], aw_ref[...],
                 preferred_element_type=jnp.float32) + ab_ref[...]
    fv = jnp.dot(vx_ref[...], vw_ref[...],
                 preferred_element_type=jnp.float32) + vb_ref[...]
    zy = fa * fv                                    # (tb, rank*O), VPU elementwise
    # Weighted reduction over rank folded into one more MXU dot:
    #   wsum[r*O + o, o'] = fusion_weights[r] * (o == o')
    o_ref[...] = (jnp.dot(zy, wsum_ref[...],
                          preferred_element_type=jnp.float32)
                  + bias_ref[...]).astype(o_ref.dtype)


def lmf_forward(audio_x, video_x, audio_factor, video_factor,
                fusion_weights, fusion_bias, *, block_b=512):
    """Pallas implementation of the low-rank fusion forward pass."""
    B, a_in = audio_x.shape
    _, v_in = video_x.shape
    rank, a1, O = audio_factor.shape
    _, v1, _ = video_factor.shape
    assert a1 == a_in + 1 and v1 == v_in + 1
    RO = rank * O
    f32 = jnp.float32

    audio_x = audio_x.astype(f32)
    video_x = video_x.astype(f32)

    # Wrapper-side layout plumbing (no ones-concat, rank folded into N):
    #   aw[i, r*O + o] = audio_factor[r, 1 + i, o]
    #   ab[0, r*O + o] = audio_factor[r, 0, o]
    aw = jnp.transpose(audio_factor[:, 1:, :], (1, 0, 2)).reshape(a_in, RO)
    ab = audio_factor[:, 0, :].reshape(1, RO)
    vw = jnp.transpose(video_factor[:, 1:, :], (1, 0, 2)).reshape(v_in, RO)
    vb = video_factor[:, 0, :].reshape(1, RO)
    # Rank-weighted sum as a tiny matmul reducer (keeps everything lane-dense).
    wsum = (fusion_weights.reshape(rank, 1, 1).astype(f32)
            * jnp.eye(O, dtype=f32)[None]).reshape(RO, O)
    bias = fusion_bias.reshape(1, O).astype(f32)

    # Batch tiling: one step for small B; a "parallel" grid over B otherwise.
    tb = min(max(8, ((B + 7) // 8) * 8), block_b)
    grid = (pl.cdiv(B, tb),)

    out = pl.pallas_call(
        _lmf_kernel,
        out_shape=jax.ShapeDtypeStruct((B, O), f32),
        grid_spec=pltpu.PrefetchScalarGridSpec(
            num_scalar_prefetch=0,
            grid=grid,
            in_specs=[
                pl.BlockSpec((tb, a_in), lambda i: (i, 0)),   # audio activations
                pl.BlockSpec((tb, v_in), lambda i: (i, 0)),   # video activations
                pl.BlockSpec((a_in, RO), lambda i: (0, 0)),   # audio factor (resident)
                pl.BlockSpec((1, RO), lambda i: (0, 0)),      # audio bias row
                pl.BlockSpec((v_in, RO), lambda i: (0, 0)),   # video factor (resident)
                pl.BlockSpec((1, RO), lambda i: (0, 0)),      # video bias row
                pl.BlockSpec((RO, O), lambda i: (0, 0)),      # rank-weighted reducer
                pl.BlockSpec((1, O), lambda i: (0, 0)),       # fusion bias
            ],
            out_specs=pl.BlockSpec((tb, O), lambda i: (i, 0)),
        ),
        compiler_params=pltpu.CompilerParams(
            dimension_semantics=("parallel",),
        ),
    )(audio_x, video_x, aw, ab, vw, vb, wsum, bias)
    return out


def _xavier_normal(key, shape):
    # Matches torch.nn.init.xavier_normal_ fan computation for >=2D tensors.
    rf = 1
    for d in shape[2:]:
        rf *= d
    fan_in = shape[1] * rf
    fan_out = shape[0] * rf
    std = math.sqrt(2.0 / (fan_in + fan_out))
    return std * jax.random.normal(key, shape, dtype=jnp.float32)


def _reference(audio_x, video_x, audio_factor, video_factor,
               fusion_weights, fusion_bias):
    B = audio_x.shape[0]
    ones = jnp.ones((B, 1), dtype=audio_x.dtype)
    ah = jnp.concatenate([ones, audio_x], axis=1)
    vh = jnp.concatenate([ones, video_x], axis=1)
    fa = jnp.einsum("bi,rio->rbo", ah, audio_factor)
    fv = jnp.einsum("bi,rio->rbo", vh, video_factor)
    zy = fa * fv
    out = jnp.einsum("r,rbo->bo", fusion_weights[0], zy)
    return out + fusion_bias


if __name__ == "__main__":
    # Small shapes consistent with the fusion head.
    B = 8
    audio_in, video_in = 16, 24
    output_dim = 4
    rank = 4

    key = jax.random.PRNGKey(0)
    k_ax, k_vx, k_af, k_vf, k_fw = jax.random.split(key, 5)

    audio_x = jax.random.normal(k_ax, (B, audio_in), dtype=jnp.float32)
    video_x = jax.random.normal(k_vx, (B, video_in), dtype=jnp.float32)

    audio_factor = _xavier_normal(k_af, (rank, audio_in + 1, output_dim))
    video_factor = _xavier_normal(k_vf, (rank, video_in + 1, output_dim))
    fusion_weights = _xavier_normal(k_fw, (1, rank))
    fusion_bias = jnp.zeros((1, output_dim), dtype=jnp.float32)
    # NOTE: dropout layers are declared in the module but inference-mode here,
    # so no dropout is applied.

    out = jax.block_until_ready(
        lmf_forward(audio_x, video_x, audio_factor, video_factor,
                    fusion_weights, fusion_bias))

    ref = _reference(audio_x, video_x, audio_factor, video_factor,
                     fusion_weights, fusion_bias)
    assert out.shape == (B, output_dim)
    assert jnp.allclose(out, ref, atol=2e-5, rtol=2e-4), (out, ref)

    print("KERNEL_OK")
</pallas_src>

<mosaic_0001>
module attributes {stable_mosaic.version = 11 : i64} {
  func.func @_lmf_kernel(%arg0: i32, %arg1: memref<8x16xf32, #tpu.memory_space<vmem>>, %arg2: memref<8x24xf32, #tpu.memory_space<vmem>>, %arg3: memref<16x16xf32, #tpu.memory_space<vmem>>, %arg4: memref<1x16xf32, #tpu.memory_space<vmem>>, %arg5: memref<24x16xf32, #tpu.memory_space<vmem>>, %arg6: memref<1x16xf32, #tpu.memory_space<vmem>>, %arg7: memref<16x4xf32, #tpu.memory_space<vmem>>, %arg8: memref<1x4xf32, #tpu.memory_space<vmem>>, %arg9: memref<8x4xf32, #tpu.memory_space<vmem>>) attributes {dimension_semantics = [#tpu.dimension_semantics<parallel>], iteration_bounds = array<i64: 1>, scalar_prefetch = 0 : i64, scratch_operands = 0 : i64, tpu.core_type = #tpu.core_type<tc>, window_params = [{transform_indices = @transform_0, window_bounds = array<i64: 8, 16>}, {transform_indices = @transform_1, window_bounds = array<i64: 8, 24>}, {pipeline_mode = #tpu.pipeline_mode<synchronous>, transform_indices = @transform_2, window_bounds = array<i64: 16, 16>}, {pipeline_mode = #tpu.pipeline_mode<synchronous>, transform_indices = @transform_3, window_bounds = array<i64: 1, 16>}, {pipeline_mode = #tpu.pipeline_mode<synchronous>, transform_indices = @transform_4, window_bounds = array<i64: 24, 16>}, {pipeline_mode = #tpu.pipeline_mode<synchronous>, transform_indices = @transform_5, window_bounds = array<i64: 1, 16>}, {pipeline_mode = #tpu.pipeline_mode<synchronous>, transform_indices = @transform_6, window_bounds = array<i64: 16, 4>}, {pipeline_mode = #tpu.pipeline_mode<synchronous>, transform_indices = @transform_7, window_bounds = array<i64: 1, 4>}, {transform_indices = @transform_8, window_bounds = array<i64: 8, 4>}]} {
    %c0 = arith.constant 0 : index
    %c0_0 = arith.constant 0 : index
    %0 = vector.load %arg1[%c0, %c0_0] : memref<8x16xf32, #tpu.memory_space<vmem>>, vector<8x16xf32>
    %c0_1 = arith.constant 0 : index
    %c0_2 = arith.constant 0 : index
    %1 = vector.load %arg3[%c0_1, %c0_2] : memref<16x16xf32, #tpu.memory_space<vmem>>, vector<16x16xf32>
    %cst = arith.constant dense<0.000000e+00> : vector<8x16xf32>
    %2 = tpu.matmul %0, %1, %cst {dimension_numbers = #tpu.dot_dimension_numbers<[1], [0], [0], [1], [0, 0, 1, 1], [], []>} : vector<8x16xf32>, vector<16x16xf32>, vector<8x16xf32> -> vector<8x16xf32>
    %c0_3 = arith.constant 0 : index
    %c0_4 = arith.constant 0 : index
    %3 = vector.load %arg4[%c0_3, %c0_4] : memref<1x16xf32, #tpu.memory_space<vmem>>, vector<1x16xf32>
    %4 = vector.broadcast %3 : vector<1x16xf32> to vector<8x16xf32>
    %5 = arith.addf %2, %4 : vector<8x16xf32>
    %c0_5 = arith.constant 0 : index
    %c0_6 = arith.constant 0 : index
    %6 = vector.load %arg2[%c0_5, %c0_6] : memref<8x24xf32, #tpu.memory_space<vmem>>, vector<8x24xf32>
    %c0_7 = arith.constant 0 : index
    %c0_8 = arith.constant 0 : index
    %7 = vector.load %arg5[%c0_7, %c0_8] : memref<24x16xf32, #tpu.memory_space<vmem>>, vector<24x16xf32>
    %cst_9 = arith.constant dense<0.000000e+00> : vector<8x16xf32>
    %8 = tpu.matmul %6, %7, %cst_9 {dimension_numbers = #tpu.dot_dimension_numbers<[1], [0], [0], [1], [0, 0, 1, 1], [], []>} : vector<8x24xf32>, vector<24x16xf32>, vector<8x16xf32> -> vector<8x16xf32>
    %c0_10 = arith.constant 0 : index
    %c0_11 = arith.constant 0 : index
    %9 = vector.load %arg6[%c0_10, %c0_11] : memref<1x16xf32, #tpu.memory_space<vmem>>, vector<1x16xf32>
    %10 = vector.broadcast %9 : vector<1x16xf32> to vector<8x16xf32>
    %11 = arith.addf %8, %10 : vector<8x16xf32>
    %12 = arith.mulf %5, %11 : vector<8x16xf32>
    %c0_12 = arith.constant 0 : index
    %c0_13 = arith.constant 0 : index
    %13 = vector.load %arg7[%c0_12, %c0_13] : memref<16x4xf32, #tpu.memory_space<vmem>>, vector<16x4xf32>
    %cst_14 = arith.constant dense<0.000000e+00> : vector<8x4xf32>
    %14 = tpu.matmul %12, %13, %cst_14 {dimension_numbers = #tpu.dot_dimension_numbers<[1], [0], [0], [1], [0, 0, 1, 1], [], []>} : vector<8x16xf32>, vector<16x4xf32>, vector<8x4xf32> -> vector<8x4xf32>
    %c0_15 = arith.constant 0 : index
    %c0_16 = arith.constant 0 : index
    %15 = vector.load %arg8[%c0_15, %c0_16] : memref<1x4xf32, #tpu.memory_space<vmem>>, vector<1x4xf32>
    %16 = vector.broadcast %15 : vector<1x4xf32> to vector<8x4xf32>
    %17 = arith.addf %14, %16 : vector<8x4xf32>
    %c0_17 = arith.constant 0 : index
    %c0_18 = arith.constant 0 : index
    %18 = vector.load %arg9[%c0_17, %c0_18] : memref<8x4xf32, #tpu.memory_space<vmem>>, vector<8x4xf32>
    tpu.vector_store %arg9[%c0_17, %c0_18], %17 {strides = array<i32>} : memref<8x4xf32, #tpu.memory_space<vmem>>, vector<8x4xf32>,
    return
  }
  func.func @transform_0(%arg0: i32) -> (i32, i32) {
    %c0_i32 = arith.constant 0 : i32
    %c0_i32_0 = arith.constant 0 : i32
    return %arg0, %c0_i32 : i32, i32
  }
  func.func @transform_1(%arg0: i32) -> (i32, i32) {
    %c0_i32 = arith.constant 0 : i32
    %c0_i32_0 = arith.constant 0 : i32
    return %arg0, %c0_i32 : i32, i32
  }
  func.func @transform_2(%arg0: i32) -> (i32, i32) {
    %c0_i32 = arith.constant 0 : i32
    %c0_i32_0 = arith.constant 0 : i32
    %c0_i32_1 = arith.constant 0 : i32
    return %c0_i32, %c0_i32_0 : i32, i32
  }
  func.func @transform_3(%arg0: i32) -> (i32, i32) {
    %c0_i32 = arith.constant 0 : i32
    %c0_i32_0 = arith.constant 0 : i32
    %c0_i32_1 = arith.constant 0 : i32
    return %c0_i32, %c0_i32_0 : i32, i32
  }
  func.func @transform_4(%arg0: i32) -> (i32, i32) {
    %c0_i32 = arith.constant 0 : i32
    %c0_i32_0 = arith.constant 0 : i32
    %c0_i32_1 = arith.constant 0 : i32
    return %c0_i32, %c0_i32_0 : i32, i32
  }
  func.func @transform_5(%arg0: i32) -> (i32, i32) {
    %c0_i32 = arith.constant 0 : i32
    %c0_i32_0 = arith.constant 0 : i32
    %c0_i32_1 = arith.constant 0 : i32
    return %c0_i32, %c0_i32_0 : i32, i32
  }
  func.func @transform_6(%arg0: i32) -> (i32, i32) {
    %c0_i32 = arith.constant 0 : i32
    %c0_i32_0 = arith.constant 0 : i32
    %c0_i32_1 = arith.constant 0 : i32
    return %c0_i32, %c0_i32_0 : i32, i32
  }
  func.func @transform_7(%arg0: i32) -> (i32, i32) {
    %c0_i32 = arith.constant 0 : i32
    %c0_i32_0 = arith.constant 0 : i32
    %c0_i32_1 = arith.constant 0 : i32
    return %c0_i32, %c0_i32_0 : i32, i32
  }
  func.func @transform_8(%arg0: i32) -> (i32, i32) {
    %c0_i32 = arith.constant 0 : i32
    %c0_i32_0 = arith.constant 0 : i32
    return %arg0, %c0_i32 : i32, i32
  }
}

</mosaic_0001>

<llo_original>
// kernel: tpu_custom_call.1
$region0: #{tpu_custom_call.1}
  #allocation0 [shape = 'u32[]', space=smem, size = 0x4, offset = 0x4, fixed_abs, tag = 'smem constant byte address 0x4 - core index']
  #allocation1 [shape = 'u32[144,128]{1,0:T(1,128)}', space=vmem, size = 0x12000, scoped, tag = 'internal scratch']
  %s0 = inlined_call_operand.vmem [shape: f32[8,16], index: 0, kind: input, shape index: {}]
  %s1 = inlined_call_operand.vmem [shape: f32[8,24], index: 1, kind: input, shape index: {}]
  %s2 = inlined_call_operand.vmem [shape: f32[16,16], index: 2, kind: input, shape index: {}]
  %s3 = inlined_call_operand.vmem [shape: f32[1,16], index: 3, kind: input, shape index: {}]
  %s4 = inlined_call_operand.vmem [shape: f32[24,16], index: 4, kind: input, shape index: {}]
  %s5 = inlined_call_operand.vmem [shape: f32[1,16], index: 5, kind: input, shape index: {}]
  %s6 = inlined_call_operand.vmem [shape: f32[16,4], index: 6, kind: input, shape index: {}]
  %s7 = inlined_call_operand.vmem [shape: f32[1,4], index: 7, kind: input, shape index: {}]
  %s8 = inlined_call_operand.vmem [shape: f32[8,4], index: 8, kind: output, shape index: {}]
  %s9 = sld [smem:[#allocation0]]
  $region42: #{tpu_custom_call.1} parent=0
    _
  %s11 = ssub.s32 1, %s9
  %s12 = scalar_select 0, %s11, %s9
  // Predicated region
  $region2: #{tpu_custom_call.1} parent=0 // pred_check
    _
  $region3: #{tpu_custom_call.1} parent=0 // pred_check_branch
    %14 = sbr.rel (0) target = $region5
  $region4: #{tpu_custom_call.1} parent=0 // pred_region
    _
  $region5: #{tpu_custom_call.1} parent=0 // pred_fallthru
    _
  // Predicated region
  $region6: #{tpu_custom_call.1} parent=0 // pred_check
    _
  $region7: #{tpu_custom_call.1} parent=0 // pred_check_branch
    %16 = sbr.rel (0) target = $region9
  $region8: #{tpu_custom_call.1} parent=0 // pred_region
    _
  $region9: #{tpu_custom_call.1} parent=0 // pred_fallthru
    _
  // Predicated region
  $region10: #{tpu_custom_call.1} parent=0 // pred_check
    _
  $region11: #{tpu_custom_call.1} parent=0 // pred_check_branch
    %18 = sbr.rel (0) target = $region13
  $region12: #{tpu_custom_call.1} parent=0 // pred_region
    _
  $region13: #{tpu_custom_call.1} parent=0 // pred_fallthru
    _
  // Predicated region
  $region14: #{tpu_custom_call.1} parent=0 // pred_check
    _
  $region15: #{tpu_custom_call.1} parent=0 // pred_check_branch
    %20 = sbr.rel (0) target = $region17
  $region16: #{tpu_custom_call.1} parent=0 // pred_region
    _
  $region17: #{tpu_custom_call.1} parent=0 // pred_fallthru
    _
  // Predicated region
  $region18: #{tpu_custom_call.1} parent=0 // pred_check
    _
  $region19: #{tpu_custom_call.1} parent=0 // pred_check_branch
    %22 = sbr.rel (0) target = $region21
  $region20: #{tpu_custom_call.1} parent=0 // pred_region
    _
  $region21: #{tpu_custom_call.1} parent=0 // pred_fallthru
    _
  // Predicated region
  $region22: #{tpu_custom_call.1} parent=0 // pred_check
    _
  $region23: #{tpu_custom_call.1} parent=0 // pred_check_branch
    %24 = sbr.rel (0) target = $region25
  $region24: #{tpu_custom_call.1} parent=0 // pred_region
    _
  $region25: #{tpu_custom_call.1} parent=0 // pred_fallthru
    _
  // Predicated region
  $region26: #{tpu_custom_call.1} parent=0 // pred_check
    _
  $region27: #{tpu_custom_call.1} parent=0 // pred_check_branch
    %26 = sbr.rel (0) target = $region29
  $region28: #{tpu_custom_call.1} parent=0 // pred_region
    _
  $region29: #{tpu_custom_call.1} parent=0 // pred_fallthru
    _
  // Predicated region
  $region30: #{tpu_custom_call.1} parent=0 // pred_check
    _
  $region31: #{tpu_custom_call.1} parent=0 // pred_check_branch
    %28 = sbr.rel (0) target = $region33
  $region32: #{tpu_custom_call.1} parent=0 // pred_region
    _
  $region33: #{tpu_custom_call.1} parent=0 // pred_fallthru
    _
  %v29 = vld [vmem:[%s0] sm:$0xff]
  %v30 = vld [vmem:[%s2] sm:$0xff]
  %v31 = vld [vmem:[%s2 + $0x8] sm:$0xff]
  %v32 = vld [vmem:[%s3] sm:$0x1]
  %v34 = vlaneseq
  %v35 = vshrl.u32 %v34, 7
  %v36 = vsub.s32 0, %v35
  %v37 = vrot.slane %v32, %v36
  %vm39 = vcmask 130048
  %v41 = vsel %vm39, %v29, 0
  %43 = vmatprep.subr.mxu0 0.0
  %44 = vmatpush1.msra.mxu0 %v30
  %45 = vmatprep.subr.mxu0 0.0
  %46 = vmatpush1.msra.mxu0 %v31
  %47 = vmatprep.subr.mxu0 0.0
  %48 = vmatpush1.msra.mxu0 0.0
  %49 = vmatprep.subr.mxu0 0.0
  %50 = vmatpush1.msra.mxu0 0.0
  %51 = vmatprep.subr.mxu0 0.0
  %52 = vmatpush1.msra.mxu0 0.0
  %53 = vmatprep.subr.mxu0 0.0
  %54 = vmatpush1.msra.mxu0 0.0
  %55 = vmatprep.subr.mxu0 0.0
  %56 = vmatpush1.msra.mxu0 0.0
  %57 = vmatprep.subr.mxu0 0.0
  %58 = vmatpush1.msra.mxu0 0.0
  %59 = vmatprep.subr.mxu0 0.0
  %60 = vmatpush1.msra.mxu0 0.0
  %61 = vmatprep.subr.mxu0 0.0
  %62 = vmatpush1.msra.mxu0 0.0
  %63 = vmatprep.subr.mxu0 0.0
  %64 = vmatpush1.msra.mxu0 0.0
  %65 = vmatprep.subr.mxu0 0.0
  %66 = vmatpush1.msra.mxu0 0.0
  %67 = vmatprep.subr.mxu0 0.0
  %68 = vmatpush1.msra.mxu0 0.0
  %69 = vmatprep.subr.mxu0 0.0
  %70 = vmatpush1.msra.mxu0 0.0
  %71 = vmatprep.subr.mxu0 0.0
  %72 = vmatpush1.msra.mxu0 0.0
  %73 = vmatprep.subr.mxu0 0.0
  %74 = vmatpush1.msra.mxu0 0.0
  %75 = vmatprep.subr.mxu0 0.0
  %76 = vmatpush1.msra.mxu0 0.0
  %77 = vmatprep.subr.mxu0 0.0
  %78 = vmatpush1.msra.mxu0 0.0
  %79 = vmatprep.subr.mxu0 0.0
  %80 = vmatpush1.msra.mxu0 0.0
  %81 = vmatprep.subr.mxu0 0.0
  %82 = vmatpush1.msra.mxu0 0.0
  %83 = vmatprep.subr.mxu0 0.0
  %84 = vmatpush1.msra.mxu0 0.0
  %85 = vmatprep.subr.mxu0 0.0
  %86 = vmatpush1.msra.mxu0 0.0
  %87 = vmatprep.subr.mxu0 0.0
  %88 = vmatpush1.msra.mxu0 0.0
  %89 = vmatprep.subr.mxu0 0.0
  %90 = vmatpush1.msra.mxu0 0.0
  %91 = vmatprep.subr.mxu0 0.0
  %92 = vmatpush1.msra.mxu0 0.0
  %93 = vmatprep.subr.mxu0 0.0
  %94 = vmatpush1.msra.mxu0 0.0
  %95 = vmatprep.subr.mxu0 0.0
  %96 = vmatpush1.msra.mxu0 0.0
  %97 = vmatprep.subr.mxu0 0.0
  %98 = vmatpush1.msra.mxu0 0.0
  %99 = vmatprep.subr.mxu0 0.0
  %100 = vmatpush1.msra.mxu0 0.0
  %101 = vmatprep.subr.mxu0 0.0
  %102 = vmatpush1.msra.mxu0 0.0
  %103 = vmatprep.subr.mxu0 0.0
  %104 = vmatpush1.msra.mxu0 0.0
  %105 = vmatprep.subr.mxu0 0.0
  %106 = vmatpush1.msra.mxu0 0.0
  %107 = vmatprep.mubr.f32.mxu0 0.0
  %108 = vmatmul.mubr.f32.gmra.mrb[0].mxu0 %v41
  %v109 = vpop.f32.mrb[0].mxu0
  %v110 = vadd.f32 %v37, %v109
  %v111 = vpop.f32.mrb[0].mxu0
  %112 = vdwg.mxu0
  %v113 = vld [vmem:[%s1] sm:$0xff]
  %v114 = vld [vmem:[%s4] sm:$0xff]
  %v115 = vld [vmem:[%s4 + $0x8] sm:$0xff]
  %v116 = vld [vmem:[%s4 + $0x10] sm:$0xff]
  %v117 = vld [vmem:[%s5] sm:$0x1]
  %v119 = vlaneseq
  %v120 = vshrl.u32 %v119, 7
  %v121 = vsub.s32 0, %v120
  %v122 = vrot.slane %v117, %v121
  %vm124 = vcmask 195584
  %v126 = vsel %vm124, %v113, 0
  %128 = vmatprep.subr.mxu0 0.0
  %129 = vmatpush1.msra.mxu0 %v114
  %130 = vmatprep.subr.mxu0 0.0
  %131 = vmatpush1.msra.mxu0 %v115
  %132 = vmatprep.subr.mxu0 0.0
  %133 = vmatpush1.msra.mxu0 %v116
  %134 = vmatprep.subr.mxu0 0.0
  %135 = vmatpush1.msra.mxu0 0.0
  %136 = vmatprep.subr.mxu0 0.0
  %137 = vmatpush1.msra.mxu0 0.0
  %138 = vmatprep.subr.mxu0 0.0
  %139 = vmatpush1.msra.mxu0 0.0
  %140 = vmatprep.subr.mxu0 0.0
  %141 = vmatpush1.msra.mxu0 0.0
  %142 = vmatprep.subr.mxu0 0.0
  %143 = vmatpush1.msra.mxu0 0.0
  %144 = vmatprep.subr.mxu0 0.0
  %145 = vmatpush1.msra.mxu0 0.0
  %146 = vmatprep.subr.mxu0 0.0
  %147 = vmatpush1.msra.mxu0 0.0
  %148 = vmatprep.subr.mxu0 0.0
  %149 = vmatpush1.msra.mxu0 0.0
  %150 = vmatprep.subr.mxu0 0.0
  %151 = vmatpush1.msra.mxu0 0.0
  %152 = vmatprep.subr.mxu0 0.0
  %153 = vmatpush1.msra.mxu0 0.0
  %154 = vmatprep.subr.mxu0 0.0
  %155 = vmatpush1.msra.mxu0 0.0
  %156 = vmatprep.subr.mxu0 0.0
  %157 = vmatpush1.msra.mxu0 0.0
  %158 = vmatprep.subr.mxu0 0.0
  %159 = vmatpush1.msra.mxu0 0.0
  %160 = vmatprep.subr.mxu0 0.0
  %161 = vmatpush1.msra.mxu0 0.0
  %162 = vmatprep.subr.mxu0 0.0
  %163 = vmatpush1.msra.mxu0 0.0
  %164 = vmatprep.subr.mxu0 0.0
  %165 = vmatpush1.msra.mxu0 0.0
  %166 = vmatprep.subr.mxu0 0.0
  %167 = vmatpush1.msra.mxu0 0.0
  %168 = vmatprep.subr.mxu0 0.0
  %169 = vmatpush1.msra.mxu0 0.0
  %170 = vmatprep.subr.mxu0 0.0
  %171 = vmatpush1.msra.mxu0 0.0
  %172 = vmatprep.subr.mxu0 0.0
  %173 = vmatpush1.msra.mxu0 0.0
  %174 = vmatprep.subr.mxu0 0.0
  %175 = vmatpush1.msra.mxu0 0.0
  %176 = vmatprep.subr.mxu0 0.0
  %177 = vmatpush1.msra.mxu0 0.0
  %178 = vmatprep.subr.mxu0 0.0
  %179 = vmatpush1.msra.mxu0 0.0
  %180 = vmatprep.subr.mxu0 0.0
  %181 = vmatpush1.msra.mxu0 0.0
  %182 = vmatprep.subr.mxu0 0.0
  %183 = vmatpush1.msra.mxu0 0.0
  %184 = vmatprep.subr.mxu0 0.0
  %185 = vmatpush1.msra.mxu0 0.0
  %186 = vmatprep.subr.mxu0 0.0
  %187 = vmatpush1.msra.mxu0 0.0
  %188 = vmatprep.subr.mxu0 0.0
  %189 = vmatpush1.msra.mxu0 0.0
  %190 = vmatprep.subr.mxu0 0.0
  %191 = vmatpush1.msra.mxu0 0.0
  %192 = vmatprep.mubr.f32.mxu0 0.0
  %193 = vmatmul.mubr.f32.gmra.mrb[0].mxu0 %v126
  %v194 = vpop.f32.mrb[0].mxu0
  %v195 = vadd.f32 %v122, %v194
  %v196 = vpop.f32.mrb[0].mxu0
  %197 = vdwg.mxu0
  %v198 = vmul.f32 %v110, %v195
  %v199 = vld [vmem:[%s6] sm:$0xff]
  %v200 = vld [vmem:[%s6 + $0x8] sm:$0xff]
  %v201 = vld [vmem:[%s7] sm:$0x1]
  %v203 = vlaneseq
  %v204 = vshrl.u32 %v203, 7
  %v205 = vsub.s32 0, %v204
  %v206 = vrot.slane %v201, %v205
  %v209 = vsel %vm39, %v198, 0
  %211 = vmatprep.subr.mxu0 0.0
  %212 = vmatpush1.msra.mxu0 %v199
  %213 = vmatprep.subr.mxu0 0.0
  %214 = vmatpush1.msra.mxu0 %v200
  %215 = vmatprep.subr.mxu0 0.0
  %216 = vmatpush1.msra.mxu0 0.0
  %217 = vmatprep.subr.mxu0 0.0
  %218 = vmatpush1.msra.mxu0 0.0
  %219 = vmatprep.subr.mxu0 0.0
  %220 = vmatpush1.msra.mxu0 0.0
  %221 = vmatprep.subr.mxu0 0.0
  %222 = vmatpush1.msra.mxu0 0.0
  %223 = vmatprep.subr.mxu0 0.0
  %224 = vmatpush1.msra.mxu0 0.0
  %225 = vmatprep.subr.mxu0 0.0
  %226 = vmatpush1.msra.mxu0 0.0
  %227 = vmatprep.subr.mxu0 0.0
  %228 = vmatpush1.msra.mxu0 0.0
  %229 = vmatprep.subr.mxu0 0.0
  %230 = vmatpush1.msra.mxu0 0.0
  %231 = vmatprep.subr.mxu0 0.0
  %232 = vmatpush1.msra.mxu0 0.0
  %233 = vmatprep.subr.mxu0 0.0
  %234 = vmatpush1.msra.mxu0 0.0
  %235 = vmatprep.subr.mxu0 0.0
  %236 = vmatpush1.msra.mxu0 0.0
  %237 = vmatprep.subr.mxu0 0.0
  %238 = vmatpush1.msra.mxu0 0.0
  %239 = vmatprep.subr.mxu0 0.0
  %240 = vmatpush1.msra.mxu0 0.0
  %241 = vmatprep.subr.mxu0 0.0
  %242 = vmatpush1.msra.mxu0 0.0
  %243 = vmatprep.subr.mxu0 0.0
  %244 = vmatpush1.msra.mxu0 0.0
  %245 = vmatprep.subr.mxu0 0.0
  %246 = vmatpush1.msra.mxu0 0.0
  %247 = vmatprep.subr.mxu0 0.0
  %248 = vmatpush1.msra.mxu0 0.0
  %249 = vmatprep.subr.mxu0 0.0
  %250 = vmatpush1.msra.mxu0 0.0
  %251 = vmatprep.subr.mxu0 0.0
  %252 = vmatpush1.msra.mxu0 0.0
  %253 = vmatprep.subr.mxu0 0.0
  %254 = vmatpush1.msra.mxu0 0.0
  %255 = vmatprep.subr.mxu0 0.0
  %256 = vmatpush1.msra.mxu0 0.0
  %257 = vmatprep.subr.mxu0 0.0
  %258 = vmatpush1.msra.mxu0 0.0
  %259 = vmatprep.subr.mxu0 0.0
  %260 = vmatpush1.msra.mxu0 0.0
  %261 = vmatprep.subr.mxu0 0.0
  %262 = vmatpush1.msra.mxu0 0.0
  %263 = vmatprep.subr.mxu0 0.0
  %264 = vmatpush1.msra.mxu0 0.0
  %265 = vmatprep.subr.mxu0 0.0
  %266 = vmatpush1.msra.mxu0 0.0
  %267 = vmatprep.subr.mxu0 0.0
  %268 = vmatpush1.msra.mxu0 0.0
  %269 = vmatprep.subr.mxu0 0.0
  %270 = vmatpush1.msra.mxu0 0.0
  %271 = vmatprep.subr.mxu0 0.0
  %272 = vmatpush1.msra.mxu0 0.0
  %273 = vmatprep.subr.mxu0 0.0
  %274 = vmatpush1.msra.mxu0 0.0
  %275 = vmatprep.mubr.f32.mxu0 0.0
  %276 = vmatmul.mubr.f32.gmra.mrb[0].mxu0 %v209
  %v277 = vpop.f32.mrb[0].mxu0
  %v278 = vadd.f32 %v206, %v277
  %v279 = vpop.f32.mrb[0].mxu0
  %280 = vdwg.mxu0
  %vm281 = vcmask 31744
  %282 = vst.msk [vmem:[%s8] sm:$0xff] %vm281, %v278
  // Predicated region
  $region34: #{tpu_custom_call.1} parent=0 // pred_check
    _
  $region35: #{tpu_custom_call.1} parent=0 // pred_check_branch
    %284 = sbr.rel (0) target = $region37
  $region36: #{tpu_custom_call.1} parent=0 // pred_region
    _
  $region37: #{tpu_custom_call.1} parent=0 // pred_fallthru
    _
  // Predicated region
  $region38: #{tpu_custom_call.1} parent=0 // pred_check
    _
  $region39: #{tpu_custom_call.1} parent=0 // pred_check_branch
    %286 = sbr.rel (0) target = $region41
  $region40: #{tpu_custom_call.1} parent=0 // pred_region
    _
  $region41: #{tpu_custom_call.1} parent=0 // pred_fallthru
    _

</llo_original>
